<compile_context>
chip_gen: v7x
topology: tpu7x:2x2x1
jax: 0.10.0
libtpu: 0.0.40
codegen_flags: <defaults>
</compile_context>

<pallas_src>
import functools

import jax
import jax.numpy as jnp
from jax.experimental import pallas as pl
from jax.experimental.pallas import tpu as pltpu


# --------------------------------------------------------------------------
# Generation-aware budgets
# --------------------------------------------------------------------------
def _vmem_limit_bytes():
    """Scoped-VMEM limit: ~3/4 of physical VMEM, capped at 96 MiB.

    Falls back to a v7x-safe assumption (64 MiB physical -> 48 MiB scoped) if
    the hardware query is unavailable, so the same limit is valid on every
    generation.
    """
    phys = 64 * 1024 * 1024
    try:
        phys = int(pltpu.get_tpu_info().vmem_capacity_bytes)
    except Exception:
        pass
    return min(phys * 3 // 4, 96 * 1024 * 1024)


def _pick_hw_tile(hw, c_rows, itemsize, target_bytes):
    """Largest multiple-of-128 divisor of hw with c_rows*thw*itemsize <= target.

    Assumes hw % 128 == 0. Prefers the full row (thw = hw) when it fits.
    """
    if c_rows * hw * itemsize <= target_bytes:
        return hw
    per128 = c_rows * itemsize * 128
    max_units = max(1, target_bytes // per128)
    g = hw // 128
    best = 1
    d = 1
    while d * d <= g:
        if g % d == 0:
            for cand in (d, g // d):
                if cand <= max_units:
                    best = max(best, cand)
        d += 1
    return best * 128


def _pick_c_tile(c, hw, itemsize, target_bytes):
    """C-axis tile (sublane-pack multiple dividing c) for the full-hw case."""
    if c * hw * itemsize <= target_bytes:
        return c
    pack = max(1, 32 // itemsize)            # 8 for f32, 16 for bf16, 32 for i8
    for m in range(c // pack, 0, -1):
        cb = m * pack
        if c % cb == 0 and cb * hw * itemsize <= target_bytes:
            return cb
    return c                                  # fallback: full C (rare)


def _choose_tiles(c, hw, itemsize, vmem_limit):
    """Independent per-pass tiling: (c_blk, thw_pass1, thw_pass2)."""
    t1_target = min(vmem_limit // 3, 16 * 1024 * 1024)   # input-only, 2x in flight
    t2_target = min(vmem_limit // 6, 8 * 1024 * 1024)    # in+out, 4x in flight
    if hw % 128 == 0:
        c_blk = c
        thw1 = _pick_hw_tile(hw, c, itemsize, t1_target)
        thw2 = _pick_hw_tile(hw, c, itemsize, t2_target)
    else:
        # Full hw on lanes (full-extent last dim is always legal); tile C so a
        # block fits the tighter pass-2 budget.
        thw1 = thw2 = hw
        c_blk = _pick_c_tile(c, hw, itemsize, t2_target)
    return c_blk, thw1, thw2


# --------------------------------------------------------------------------
# Kernels
# --------------------------------------------------------------------------
def _fused_kernel(x_ref, gamma_ref, beta_ref, o_ref, *, eps, inv_m):
    """Single-call path: whole (N, C, HW) activation resident in VMEM."""
    x = x_ref[...].astype(jnp.float32)                    # (n, c, hw)
    s = jnp.sum(jnp.sum(x, axis=0), axis=1, keepdims=True)        # (c, 1)
    q = jnp.sum(jnp.sum(x * x, axis=0), axis=1, keepdims=True)    # (c, 1)
    mean = s * inv_m
    var = jnp.maximum(q * inv_m - mean * mean, 0.0)       # guard cancellation
    inv_std = jax.lax.rsqrt(var + eps)
    scale = gamma_ref[...] * inv_std                      # (c, 1)
    shift = beta_ref[...] - mean * scale                  # (c, 1)
    y = jnp.maximum(x * scale[None] + shift[None], 0.0)   # (n, c, hw)
    o_ref[...] = y.astype(o_ref.dtype)


def _stats_kernel(x_ref, psum_ref, psq_ref, *, lw):
    """Pass 1: per-(n, c-tile) partial sum / sum-of-squares.

    x_ref:    (c_blk, thw)  current tile (N squeezed)
    psum_ref: (c_blk, lw)   f32 output block, resident across the HW grid axis
    psq_ref:  (c_blk, lw)   f32 output block, resident across the HW grid axis
    lw == 128 when hw is a multiple of 128 (lane-dense partials, no per-tile
    cross-lane reduce); lw == 1 otherwise (full lane reduce per tile).
    """
    hi = pl.program_id(2)

    @pl.when(hi == 0)
    def _():
        psum_ref[...] = jnp.zeros_like(psum_ref)
        psq_ref[...] = jnp.zeros_like(psq_ref)

    if lw == 1:
        x = x_ref[...].astype(jnp.float32)
        psum_ref[...] += jnp.sum(x, axis=1, keepdims=True)
        psq_ref[...] += jnp.sum(x * x, axis=1, keepdims=True)
    else:
        c_blk, thw = x_ref.shape
        nchunks = thw // 128
        if nchunks <= 32:
            s = jnp.zeros((c_blk, 128), jnp.float32)
            q = jnp.zeros((c_blk, 128), jnp.float32)
            for j in range(nchunks):
                xs = x_ref[:, pl.ds(j * 128, 128)].astype(jnp.float32)
                s = s + xs
                q = q + xs * xs
            psum_ref[...] += s
            psq_ref[...] += q
        else:
            @pl.loop(0, nchunks)
            def _(j):
                off = pl.multiple_of(j * 128, 128)
                xs = x_ref[:, pl.ds(off, 128)].astype(jnp.float32)
                psum_ref[...] += xs
                psq_ref[...] += xs * xs


def _apply_kernel(x_ref, scale_ref, shift_ref, o_ref):
    """Pass 2: y = max(x * scale + shift, 0) on one (c_blk, thw) tile."""
    x = x_ref[...].astype(jnp.float32)
    y = jnp.maximum(x * scale_ref[...] + shift_ref[...], 0.0)
    o_ref[...] = y.astype(o_ref.dtype)


# --------------------------------------------------------------------------
# Wrapper
# --------------------------------------------------------------------------
def batch_norm_relu(x_nchw, gamma, beta, eps=1e-5, force_two_pass=False):
    """Training-mode BatchNorm2d + ReLU forward.

    x_nchw: (N, C, H, W);  gamma, beta: (C,)
    returns: (N, C, H, W), same dtype as x.
    """
    n, c, h, w = x_nchw.shape
    hw = h * w
    total = n * hw
    dtype = x_nchw.dtype
    itemsize = jnp.dtype(dtype).itemsize

    x3d = x_nchw.reshape(n, c, hw)                 # contiguous, free reshape
    eps = float(eps)
    inv_m = 1.0 / float(total)

    vmem_limit = _vmem_limit_bytes()

    # ---------------- Fused fast path (small / medium activations) ----------
    bytes_x = n * c * hw * itemsize
    bytes_f32 = n * c * hw * 4
    fused_footprint = 4 * bytes_x + 2 * bytes_f32   # in+out (2x-buffered) + temps
    if (not force_two_pass) and fused_footprint <= int(0.85 * vmem_limit):
        gamma2 = gamma.reshape(c, 1).astype(jnp.float32)
        beta2 = beta.reshape(c, 1).astype(jnp.float32)
        out3d = pl.pallas_call(
            functools.partial(_fused_kernel, eps=eps, inv_m=inv_m),
            out_shape=jax.ShapeDtypeStruct((n, c, hw), dtype),
            grid_spec=pltpu.PrefetchScalarGridSpec(
                num_scalar_prefetch=0,
                grid=(1,),
                in_specs=[
                    pl.BlockSpec((n, c, hw), lambda i: (0, 0, 0)),
                    pl.BlockSpec((c, 1), lambda i: (0, 0)),
                    pl.BlockSpec((c, 1), lambda i: (0, 0)),
                ],
                out_specs=pl.BlockSpec((n, c, hw), lambda i: (0, 0, 0)),
            ),
            compiler_params=pltpu.CompilerParams(
                dimension_semantics=("arbitrary",),
                vmem_limit_bytes=vmem_limit,
            ),
        )(x3d, gamma2, beta2)
        return out3d.reshape(n, c, h, w)

    # ---------------- Two-pass tiled path ------------------------------------
    c_blk, thw1, thw2 = _choose_tiles(c, hw, itemsize, vmem_limit)
    n_c = c // c_blk
    n_hw1 = hw // thw1
    n_hw2 = hw // thw2
    lw = 128 if thw1 % 128 == 0 else 1

    # Pass 1: per-(N, C-tile) partial sums; N / C parallel, HW reduction last.
    psum, psq = pl.pallas_call(
        functools.partial(_stats_kernel, lw=lw),
        out_shape=(
            jax.ShapeDtypeStruct((n, c, lw), jnp.float32),
            jax.ShapeDtypeStruct((n, c, lw), jnp.float32),
        ),
        grid_spec=pltpu.PrefetchScalarGridSpec(
            num_scalar_prefetch=0,
            grid=(n, n_c, n_hw1),
            in_specs=[
                pl.BlockSpec((None, c_blk, thw1),
                             lambda ni, ci, hi: (ni, ci, hi)),
            ],
            out_specs=(
                pl.BlockSpec((None, c_blk, lw), lambda ni, ci, hi: (ni, ci, 0)),
                pl.BlockSpec((None, c_blk, lw), lambda ni, ci, hi: (ni, ci, 0)),
            ),
        ),
        compiler_params=pltpu.CompilerParams(
            dimension_semantics=("parallel", "parallel", "arbitrary"),
            vmem_limit_bytes=vmem_limit,
        ),
    )(x3d)

    # Tiny finalize in plain JAX over (C,)-length vectors.
    s = jnp.sum(psum, axis=(0, 2))                         # (c,)
    q = jnp.sum(psq, axis=(0, 2))                          # (c,)
    mean = s * inv_m
    var = jnp.maximum(q * inv_m - mean * mean, 0.0)        # guard cancellation
    inv_std = jax.lax.rsqrt(var + eps)
    scale = gamma.astype(jnp.float32) * inv_std
    shift = beta.astype(jnp.float32) - mean * scale
    scale2 = scale.reshape(c, 1)
    shift2 = shift.reshape(c, 1)

    # Pass 2: normalize + ReLU, fully parallel & pipelined.
    out3d = pl.pallas_call(
        _apply_kernel,
        out_shape=jax.ShapeDtypeStruct((n, c, hw), dtype),
        grid_spec=pltpu.PrefetchScalarGridSpec(
            num_scalar_prefetch=0,
            grid=(n, n_c, n_hw2),
            in_specs=[
                pl.BlockSpec((None, c_blk, thw2),
                             lambda ni, ci, hi: (ni, ci, hi)),
                pl.BlockSpec((c_blk, 1), lambda ni, ci, hi: (ci, 0)),
                pl.BlockSpec((c_blk, 1), lambda ni, ci, hi: (ci, 0)),
            ],
            out_specs=pl.BlockSpec((None, c_blk, thw2),
                                   lambda ni, ci, hi: (ni, ci, hi)),
        ),
        compiler_params=pltpu.CompilerParams(
            dimension_semantics=("parallel", "parallel", "parallel"),
            vmem_limit_bytes=vmem_limit,
        ),
    )(x3d, scale2, shift2)

    return out3d.reshape(n, c, h, w)


# --------------------------------------------------------------------------
# Reference & test
# --------------------------------------------------------------------------
def _reference(x_nchw, gamma, beta, eps=1e-5):
    mean = jnp.mean(x_nchw, axis=(0, 2, 3), keepdims=True)
    var = jnp.mean((x_nchw - mean) ** 2, axis=(0, 2, 3), keepdims=True)
    y = (x_nchw - mean) * jax.lax.rsqrt(var + eps)
    y = y * gamma.reshape(1, -1, 1, 1) + beta.reshape(1, -1, 1, 1)
    return jnp.maximum(y, 0.0)


if __name__ == "__main__":
    key = jax.random.PRNGKey(0)
    k_x, k_g, k_b = jax.random.split(key, 3)

    N, C, H, W = 2, 4, 16, 16
    x = jax.random.normal(k_x, (N, C, H, W), dtype=jnp.float32)
    # Deterministic, non-trivial affine params (PyTorch default would be 1/0).
    gamma = 1.0 + 0.1 * jax.random.normal(k_g, (C,), dtype=jnp.float32)
    beta = 0.1 * jax.random.normal(k_b, (C,), dtype=jnp.float32)

    ref = _reference(x, gamma, beta, eps=1e-5)

    # 1) Fused VMEM-resident path (default for small activations).
    out_fused = jax.block_until_ready(batch_norm_relu(x, gamma, beta, eps=1e-5))
    assert out_fused.shape == (N, C, H, W)
    assert jnp.allclose(out_fused, ref, atol=1e-5, rtol=1e-5)

    # 2) Tiled two-pass path (forced), hw a multiple of 128.
    out_tiled = jax.block_until_ready(
        batch_norm_relu(x, gamma, beta, eps=1e-5, force_two_pass=True))
    assert jnp.allclose(out_tiled, ref, atol=1e-5, rtol=1e-5)

    # 3) Tiled two-pass path, hw NOT a multiple of 128 (full-hw / C-tile branch).
    H2, W2 = 10, 10
    x2 = jax.random.normal(k_x, (N, C, H2, W2), dtype=jnp.float32)
    ref2 = _reference(x2, gamma, beta, eps=1e-5)
    out2 = jax.block_until_ready(
        batch_norm_relu(x2, gamma, beta, eps=1e-5, force_two_pass=True))
    assert jnp.allclose(out2, ref2, atol=1e-5, rtol=1e-5)

    print("KERNEL_OK")
</pallas_src>

<mosaic_0001>
module attributes {stable_mosaic.version = 11 : i64} {
  func.func @_fused_kernel(%arg0: i32, %arg1: memref<2x4x256xf32, #tpu.memory_space<vmem>>, %arg2: memref<4x1xf32, #tpu.memory_space<vmem>>, %arg3: memref<4x1xf32, #tpu.memory_space<vmem>>, %arg4: memref<2x4x256xf32, #tpu.memory_space<vmem>>) attributes {dimension_semantics = [#tpu.dimension_semantics<arbitrary>], iteration_bounds = array<i64: 1>, scalar_prefetch = 0 : i64, scratch_operands = 0 : i64, tpu.core_type = #tpu.core_type<tc>, window_params = [{pipeline_mode = #tpu.pipeline_mode<synchronous>, transform_indices = @transform_0, window_bounds = array<i64: 2, 4, 256>}, {pipeline_mode = #tpu.pipeline_mode<synchronous>, transform_indices = @transform_1, window_bounds = array<i64: 4, 1>}, {pipeline_mode = #tpu.pipeline_mode<synchronous>, transform_indices = @transform_2, window_bounds = array<i64: 4, 1>}, {pipeline_mode = #tpu.pipeline_mode<synchronous>, transform_indices = @transform_3, window_bounds = array<i64: 2, 4, 256>}]} {
    %c0 = arith.constant 0 : index
    %c0_0 = arith.constant 0 : index
    %c0_1 = arith.constant 0 : index
    %0 = vector.load %arg1[%c0, %c0_0, %c0_1] : memref<2x4x256xf32, #tpu.memory_space<vmem>>, vector<2x4x256xf32>
    %cst = arith.constant dense<0.000000e+00> : vector<4x256xf32>
    %1 = vector.multi_reduction <add>, %0, %cst [0] : vector<2x4x256xf32> to vector<4x256xf32>
    %cst_2 = arith.constant dense<0.000000e+00> : vector<4xf32>
    %2 = vector.multi_reduction <add>, %1, %cst_2 [1] : vector<4x256xf32> to vector<4xf32>
    %3 = vector.shape_cast %2 : vector<4xf32> to vector<4x1xf32>
    %4 = arith.mulf %0, %0 : vector<2x4x256xf32>
    %cst_3 = arith.constant dense<0.000000e+00> : vector<4x256xf32>
    %5 = vector.multi_reduction <add>, %4, %cst_3 [0] : vector<2x4x256xf32> to vector<4x256xf32>
    %cst_4 = arith.constant dense<0.000000e+00> : vector<4xf32>
    %6 = vector.multi_reduction <add>, %5, %cst_4 [1] : vector<4x256xf32> to vector<4xf32>
    %7 = vector.shape_cast %6 : vector<4xf32> to vector<4x1xf32>
    %cst_5 = arith.constant 0.001953125 : f32
    %8 = vector.broadcast %cst_5 : f32 to vector<4x1xf32>
    %9 = arith.mulf %3, %8 : vector<4x1xf32>
    %cst_6 = arith.constant 0.001953125 : f32
    %10 = vector.broadcast %cst_6 : f32 to vector<4x1xf32>
    %11 = arith.mulf %7, %10 : vector<4x1xf32>
    %12 = arith.mulf %9, %9 : vector<4x1xf32>
    %13 = arith.subf %11, %12 : vector<4x1xf32>
    %cst_7 = arith.constant 0.000000e+00 : f32
    %14 = vector.broadcast %cst_7 : f32 to vector<4x1xf32>
    %15 = arith.maximumf %13, %14 : vector<4x1xf32>
    %cst_8 = arith.constant 9.99999974E-6 : f32
    %16 = vector.broadcast %cst_8 : f32 to vector<4x1xf32>
    %17 = arith.addf %15, %16 : vector<4x1xf32>
    %18 = math.rsqrt %17 : vector<4x1xf32>
    %c0_9 = arith.constant 0 : index
    %c0_10 = arith.constant 0 : index
    %19 = vector.load %arg2[%c0_9, %c0_10] : memref<4x1xf32, #tpu.memory_space<vmem>>, vector<4x1xf32>
    %20 = arith.mulf %19, %18 : vector<4x1xf32>
    %c0_11 = arith.constant 0 : index
    %c0_12 = arith.constant 0 : index
    %21 = vector.load %arg3[%c0_11, %c0_12] : memref<4x1xf32, #tpu.memory_space<vmem>>, vector<4x1xf32>
    %22 = arith.mulf %9, %20 : vector<4x1xf32>
    %23 = arith.subf %21, %22 : vector<4x1xf32>
    %24 = vector.shape_cast %20 : vector<4x1xf32> to vector<1x4x1xf32>
    %25 = vector.broadcast %24 : vector<1x4x1xf32> to vector<2x4x256xf32>
    %26 = arith.mulf %0, %25 : vector<2x4x256xf32>
    %27 = vector.shape_cast %23 : vector<4x1xf32> to vector<1x4x1xf32>
    %28 = vector.broadcast %27 : vector<1x4x1xf32> to vector<2x4x256xf32>
    %29 = arith.addf %26, %28 : vector<2x4x256xf32>
    %cst_13 = arith.constant 0.000000e+00 : f32
    %30 = vector.broadcast %cst_13 : f32 to vector<2x4x256xf32>
    %31 = arith.maximumf %29, %30 : vector<2x4x256xf32>
    %c0_14 = arith.constant 0 : index
    %c0_15 = arith.constant 0 : index
    %c0_16 = arith.constant 0 : index
    %32 = vector.load %arg4[%c0_14, %c0_15, %c0_16] : memref<2x4x256xf32, #tpu.memory_space<vmem>>, vector<2x4x256xf32>
    tpu.vector_store %arg4[%c0_14, %c0_15, %c0_16], %31 {strides = array<i32>} : memref<2x4x256xf32, #tpu.memory_space<vmem>>, vector<2x4x256xf32>,
    return
  }
  func.func @transform_0(%arg0: i32) -> (i32, i32, i32) {
    %c0_i32 = arith.constant 0 : i32
    %c0_i32_0 = arith.constant 0 : i32
    %c0_i32_1 = arith.constant 0 : i32
    %c0_i32_2 = arith.constant 0 : i32
    return %c0_i32, %c0_i32_0, %c0_i32_1 : i32, i32, i32
  }
  func.func @transform_1(%arg0: i32) -> (i32, i32) {
    %c0_i32 = arith.constant 0 : i32
    %c0_i32_0 = arith.constant 0 : i32
    %c0_i32_1 = arith.constant 0 : i32
    return %c0_i32, %c0_i32_0 : i32, i32
  }
  func.func @transform_2(%arg0: i32) -> (i32, i32) {
    %c0_i32 = arith.constant 0 : i32
    %c0_i32_0 = arith.constant 0 : i32
    %c0_i32_1 = arith.constant 0 : i32
    return %c0_i32, %c0_i32_0 : i32, i32
  }
  func.func @transform_3(%arg0: i32) -> (i32, i32, i32) {
    %c0_i32 = arith.constant 0 : i32
    %c0_i32_0 = arith.constant 0 : i32
    %c0_i32_1 = arith.constant 0 : i32
    %c0_i32_2 = arith.constant 0 : i32
    return %c0_i32, %c0_i32_0, %c0_i32_1 : i32, i32, i32
  }
}

</mosaic_0001>

<llo_original>
// kernel: tpu_custom_call.1
$region0: #{tpu_custom_call.1}
  #allocation0 [shape = 'u32[]', space=smem, size = 0x4, offset = 0x4, fixed_abs, tag = 'smem constant byte address 0x4 - core index']
  #allocation1 [shape = 'u32[144,128]{1,0:T(1,128)}', space=vmem, size = 0x12000, scoped, tag = 'internal scratch']
  %s0 = inlined_call_operand.hbm [shape: f32[2,4,256], index: 0, kind: input, shape index: {}]
  %s1 = inlined_call_operand.vmem [shape: f32[4,1], index: 1, kind: input, shape index: {}]
  %s2 = inlined_call_operand.vmem [shape: f32[4,1], index: 2, kind: input, shape index: {}]
  %s3 = inlined_call_operand.hbm [shape: f32[2,4,256], index: 3, kind: output, shape index: {}]
  %s4 = sld [smem:[#allocation0]]
  $region26: #{tpu_custom_call.1} parent=0
    _
  %s6 = ssub.s32 1, %s4
  %s7 = scalar_select 0, %s6, %s4
  $region1: #{tpu_custom_call.1} parent=0
    #allocation2 [shape = 'u8[8192]{0}', space=vmem, size = 0x2000, scoped, tag = 'input window, operand 0, single buffered']
    #allocation3 [shape = 's32[1]{0}', space=sflag, size = 0x4, scoped, tag = 'scoped memory for tpu_custom_call.1']
    #allocation4 [shape = 's32[1]{0}', space=sflag, size = 0x4, scoped, tag = 'scoped memory for tpu_custom_call.1']
    #allocation5 [shape = 'u8[8192]{0}', space=vmem, size = 0x2000, scoped, tag = 'output window, operand 0, single buffered']
    %8 = vsyncpa [#allocation3], 0
    %9 = vsyncpa [#allocation4], 0
    // Predicated region
    $region2: #{tpu_custom_call.1} parent=1 // pred_check
      _
    $region3: #{tpu_custom_call.1} parent=1 // pred_check_branch
      %11 = sbr.rel (0) target = $region5
    $region4: #{tpu_custom_call.1} parent=1 // pred_region
      %s13 = ssub.s32 256, 256
      %14 = vsyncadd [#allocation3], %s13
      %s15 = sshll.u32 [#allocation2], 4
      %s16 = int_to_ptr.vmem [resolvable:$true] %s15
      %21 = dma.hbm_to_vmem [thread:$0]  %s0, 256, %s16, [#allocation3], 128, 128, 8
    $region5: #{tpu_custom_call.1} parent=1 // pred_fallthru
      _
    // Predicated region
    $region6: #{tpu_custom_call.1} parent=1 // pred_check
      _
    $region7: #{tpu_custom_call.1} parent=1 // pred_check_branch
      %23 = sbr.rel (0) target = $region9
    $region8: #{tpu_custom_call.1} parent=1 // pred_region
      _
    $region9: #{tpu_custom_call.1} parent=1 // pred_fallthru
      _
    // Predicated region
    $region10: #{tpu_custom_call.1} parent=1 // pred_check
      _
    $region11: #{tpu_custom_call.1} parent=1 // pred_check_branch
      %25 = sbr.rel (0) target = $region13
    $region12: #{tpu_custom_call.1} parent=1 // pred_region
      _
    $region13: #{tpu_custom_call.1} parent=1 // pred_fallthru
      _
    // Predicated region
    $region14: #{tpu_custom_call.1} parent=1 // pred_check
      _
    $region15: #{tpu_custom_call.1} parent=1 // pred_check_branch
      %27 = sbr.rel (0) target = $region17
    $region16: #{tpu_custom_call.1} parent=1 // pred_region
      %28 = dma.done [#allocation3], 256
    $region17: #{tpu_custom_call.1} parent=1 // pred_fallthru
      _
    %v29 = vld [vmem:[#allocation2] sm:$0xff]
    %v30 = vld [vmem:[#allocation2 + $0x8] sm:$0xff]
    %v33 = vcombine.high %v29, %v29
    %v34 = vcombine.high %v30, %v30
    %vm37 = vcmask 1043456
    %v38 = vsel %vm37, %v29, 0.0
    %v39 = vsel %vm37, %v30, 0.0
    %v40 = vadd.f32 %v38, %v39
    %v41 = vsel %vm37, %v33, 0.0
    %v42 = vsel %vm37, %v34, 0.0
    %v43 = vadd.f32 %v41, %v42
    %v44 = vsel %vm37, %v40, 0.0
    %v45 = vsel %vm37, %v43, 0.0
    %v46 = vadd.f32 %v44, %v45
    %47 = vadd.xlane.f32.xlu0 %v46
    %v48 = vpop.xlane.xlu0 %47
    %v49 = vmul.f32 %v29, %v29
    %v50 = vmul.f32 %v30, %v30
    %v53 = vcombine.high %v49, %v49
    %v54 = vcombine.high %v50, %v50
    %v57 = vsel %vm37, %v49, 0.0
    %v58 = vsel %vm37, %v50, 0.0
    %v59 = vadd.f32 %v57, %v58
    %v60 = vsel %vm37, %v53, 0.0
    %v61 = vsel %vm37, %v54, 0.0
    %v62 = vadd.f32 %v60, %v61
    %v63 = vsel %vm37, %v59, 0.0
    %v64 = vsel %vm37, %v62, 0.0
    %v65 = vadd.f32 %v63, %v64
    %66 = vadd.xlane.f32.xlu0 %v65
    %v67 = vpop.xlane.xlu0 %66
    %v68 = vmul.f32 %v48, 0.001953125
    %v69 = vmul.f32 %v67, 0.001953125
    %v70 = vmul.f32 %v68, %v68
    %v71 = vsub.f32 %v69, %v70
    %v72 = vmax.f32 %v71, 0.0
    %v73 = vadd.f32 %v72, 1e-05
    %v74 = vrsqrt.pop %v73
    %v75 = vld [vmem:[%s1] sm:$0xf]
    %v76 = vmul.f32 %v75, %v74
    %v77 = vld [vmem:[%s2] sm:$0xf]
    %v78 = vmul.f32 %v68, %v76
    %v79 = vsub.f32 %v77, %v78
    %81 = vset.pattern.permute.xlu0 0
    %82 = vperm.xlu0 %81, %v76
    %v83 = vpop.permute.xlu0 %82
    %v85 = vunpack.c.l.s4 839922192
    %v86 = vunpack.c.0.s8 %v85
    %v87 = vlaneseq
    %v88 = vshrl.u32 %v87, 7
    %v89 = vsub.s32 %v86, %v88
    %v90 = vrot.slane %v83, %v89
    %v92 = vmul.f32 %v29, %v90
    %v93 = vmul.f32 %v30, %v90
    %95 = vset.pattern.permute.xlu0 0
    %96 = vperm.xlu0 %95, %v79
    %v97 = vpop.permute.xlu0 %96
    %v99 = vunpack.c.l.s4 839922192
    %v100 = vunpack.c.0.s8 %v99
    %v101 = vlaneseq
    %v102 = vshrl.u32 %v101, 7
    %v103 = vsub.s32 %v100, %v102
    %v104 = vrot.slane %v97, %v103
    %v106 = vadd.f32 %v92, %v104
    %v107 = vadd.f32 %v93, %v104
    %v108 = vmax.f32 %v106, 0.0
    %v109 = vmax.f32 %v107, 0.0
    %110 = vst [vmem:[#allocation5] sm:$0xff] %v108
    %111 = vst [vmem:[#allocation5 + $0x8] sm:$0xff] %v109
    // Predicated region
    $region18: #{tpu_custom_call.1} parent=1 // pred_check
      _
    $region19: #{tpu_custom_call.1} parent=1 // pred_check_branch
      %113 = sbr.rel (0) target = $region21
    $region20: #{tpu_custom_call.1} parent=1 // pred_region
      %s115 = ssub.s32 256, 256
      %116 = vsyncadd [#allocation4], %s115
      %s117 = sshll.u32 [#allocation5], 4
      %s118 = int_to_ptr.vmem [resolvable:$true] %s117
      %123 = dma.vmem_to_hbm [thread:$0]  %s118, 256, %s3, [#allocation4], 128, 128, 8
    $region21: #{tpu_custom_call.1} parent=1 // pred_fallthru
      _
    // Predicated region
    $region22: #{tpu_custom_call.1} parent=1 // pred_check
      _
    $region23: #{tpu_custom_call.1} parent=1 // pred_check_branch
      %125 = sbr.rel (0) target = $region25
    $region24: #{tpu_custom_call.1} parent=1 // pred_region
      %126 = dma.done [#allocation4], 256
    $region25: #{tpu_custom_call.1} parent=1 // pred_fallthru
      _
    %127 = vsyncpa [#allocation3], 1
    %128 = vsyncpa [#allocation4], 1

</llo_original>
